<compile_context>
chip_gen: v5e
topology: v5e:2x2
jax: 0.10.0
libtpu: 0.0.40
codegen_flags: <defaults>
</compile_context>

<pallas_src>
import functools

import jax
import jax.numpy as jnp
import numpy as np
from jax.experimental import pallas as pl
from jax.experimental.pallas import tpu as pltpu


def _cdiv(a, b):
    return -(-a // b)


def _round_up(a, b):
    return _cdiv(a, b) * b


def _conv3d_kernel(x_ref, w_ref, o_ref, *, nah, naw, wq, m_tile):
    """One grid step (b, od, mt, kdi).

    x_ref: (P, win)              phase-decomposed column window of the input
                                 for depth slice d = od*s + kdi, output tile mt;
                                 win >= m_tile + (nah-1)*wq + (naw-1).
    w_ref: (kd*nah*naw, Cout, P) whole re-laid-out filter bank (VMEM resident).
    o_ref: (Cout, m_tile)        lane-dense output tile, flat m = oh*Wq + ow.
    """
    kdi = pl.program_id(3)
    n_shifts = nah * naw

    acc = None
    for ah in range(nah):
        for aw in range(naw):
            shift = ah * wq + aw                                  # static shift
            w_slab = w_ref[kdi * n_shifts + ah * naw + aw]        # (Cout, P)
            x_slab = x_ref[:, shift:shift + m_tile]               # (P, m_tile)
            term = jnp.dot(w_slab, x_slab,
                           preferred_element_type=jnp.float32)
            acc = term if acc is None else acc + term

    @pl.when(kdi == 0)
    def _init():
        o_ref[...] = acc

    @pl.when(kdi != 0)
    def _accum():
        o_ref[...] = o_ref[...] + acc


def spatio_temporal_filtering(x_ncdhw, fbank, stride, *, m_tile_cap=1024):
    """Equivalent of SpatioTemporalFiltering.forward:
       F.conv3d(x, fbank, padding=(0, (kh-1)//2, (kw-1)//2), stride=stride)."""
    n, cin, d, h, w = x_ncdhw.shape
    cout, cin2, kd, kh, kw = fbank.shape
    assert cin == cin2, "fbank in_c must match input channels"
    s = int(stride)
    ph, pw = (kh - 1) // 2, (kw - 1) // 2
    d_out = (d - kd) // s + 1
    h_out = (h + 2 * ph - kh) // s + 1
    w_out = (w + 2 * pw - kw) // s + 1
    nah, naw = _cdiv(kh, s), _cdiv(kw, s)      # shift groups along h / w
    n_shifts = nah * naw
    p_dim = s * s * cin                        # phase-decomposed "channel" rows

    # ---- per-generation VMEM budget (v7x: 64 MiB/TC, v5e/v6e: 128 MiB) ----
    try:
        vmem_cap = int(getattr(pltpu.get_tpu_info(), "vmem_capacity_bytes",
                               64 << 20))
    except Exception:  # pragma: no cover - info query is best-effort
        vmem_cap = 64 << 20
    vmem_budget = int(0.75 * vmem_cap)

    # ---- flattened-output tiling: lane axis is m = oh*Wq + ow (128-aligned) --
    wq = max(w_out + (naw - 1), _cdiv(w + pw, s))        # padded row width
    m_total = h_out * wq
    m_tile = min(_round_up(m_total, 128), _round_up(m_tile_cap, 128))
    n_m_tiles = _cdiv(m_total, m_tile)
    m_pad = n_m_tiles * m_tile
    max_shift = (nah - 1) * wq + (naw - 1)               # largest static shift

    # Size Hq so every shifted slice of every tile stays inside L = Hq*Wq.
    hq = max(_cdiv(m_pad + max_shift, wq), _cdiv(h + ph, s))
    hp, wp = s * hq, s * wq
    l_dim = hq * wq

    # ---- single layout pass: pad + phase-decompose H/W + flatten spatial ----
    x = x_ncdhw.astype(jnp.float32)
    x = jnp.pad(x, ((0, 0), (0, 0), (0, 0),
                    (ph, hp - h - ph), (pw, wp - w - pw)))
    x = x.reshape(n, cin, d, hq, s, wq, s)
    x = x.transpose(0, 2, 4, 6, 1, 3, 5)       # (N, D, rh, rw, Cin, Hq, Wq)
    x = x.reshape(n, d, p_dim, l_dim)          # (N, D, P, L)  -- L on lanes

    # Column windows per output tile: the kernel only ever touches
    # (P, m_tile + halo) per step instead of the full (P, L) slice.
    if n_m_tiles == 1:
        win = l_dim
        x_win = x.reshape(n, d, 1, p_dim, l_dim)
    else:
        win = m_tile + max_shift
        x_win = jnp.stack(
            [jax.lax.slice_in_dim(x, mt * m_tile, mt * m_tile + win, axis=3)
             for mt in range(n_m_tiles)], axis=2)        # (N, D, MT, P, win)

    # fbank (Cout, Cin, kd, kh, kw) -> (kd*nah*naw, Cout, P) with the h/w taps
    # zero-padded up to multiples of s so every shift group uses all P phase
    # rows (full-sublane contiguous reads, no ragged cin-row copies).
    wk = jnp.pad(fbank.astype(jnp.float32),
                 ((0, 0), (0, 0), (0, 0), (0, nah * s - kh), (0, naw * s - kw)))
    wk = wk.reshape(cout, cin, kd, nah, s, naw, s)
    wk = jnp.transpose(wk, (2, 3, 5, 0, 4, 6, 1))  # (kd, ah, aw, Cout, rh, rw, c)
    wk = wk.reshape(kd * n_shifts, cout, p_dim)

    kernel = functools.partial(_conv3d_kernel, nah=nah, naw=naw, wq=wq,
                               m_tile=m_tile)

    # Scoped-VMEM budget from the actual block footprint (double-buffered).
    bytes_x = p_dim * win * 4
    bytes_o = cout * m_tile * 4
    bytes_w = kd * n_shifts * _round_up(cout, 8) * _round_up(p_dim, 128) * 4
    est = 2 * (bytes_x + bytes_o) + 2 * bytes_w + (2 << 20)
    vmem_limit = int(min(max(est, 16 << 20), vmem_budget))

    flops = 2 * n * d_out * kd * n_shifts * cout * p_dim * m_pad
    bytes_accessed = (n * d_out * kd * n_m_tiles * bytes_x
                      + bytes_w + n * d_out * cout * m_pad * 4)

    out_flat = pl.pallas_call(
        kernel,
        out_shape=jax.ShapeDtypeStruct((n, d_out, cout, m_pad), jnp.float32),
        grid=(n, d_out, n_m_tiles, kd),
        in_specs=[
            # Per-step column window of one depth slice (d = od*s + kdi).
            pl.BlockSpec((None, None, None, p_dim, win),
                         lambda b, od, mt, kdi: (b, od * s + kdi, mt, 0, 0)),
            # Whole filter bank, constant block index -> fetched once, resident.
            pl.BlockSpec((kd * n_shifts, cout, p_dim),
                         lambda b, od, mt, kdi: (0, 0, 0)),
        ],
        # Lane-dense output block, resident across the kd reduction axis.
        out_specs=pl.BlockSpec((None, None, cout, m_tile),
                               lambda b, od, mt, kdi: (b, od, 0, mt)),
        compiler_params=pltpu.CompilerParams(
            dimension_semantics=("parallel", "parallel", "parallel", "arbitrary"),
            vmem_limit_bytes=vmem_limit),
        cost_estimate=pl.CostEstimate(flops=flops, transcendentals=0,
                                      bytes_accessed=bytes_accessed),
    )(x_win, wk)

    # Strip junk columns (ow in [W_out, Wq)) / rows (m >= m_total) and permute
    # the small output back to NCDHW (outer-dim permute only).
    out = out_flat[..., :m_total].reshape(n, d_out, cout, h_out, wq)
    out = out[..., :w_out]
    return jnp.transpose(out, (0, 2, 1, 3, 4))


if __name__ == "__main__":
    key = jax.random.PRNGKey(0)
    kx, kf = jax.random.split(key)

    # small shapes consistent with the module's forward
    N, Cin, D, H, W = 2, 4, 8, 16, 16
    Cout, KD, KH, KW = 8, 3, 3, 3
    STRIDE = 2

    x = jax.random.normal(kx, (N, Cin, D, H, W), dtype=jnp.float32)
    # deterministic synthetic filter bank (shape: out_c, in_c, kd, kh, kw)
    fbank = 0.1 * jax.random.normal(kf, (Cout, Cin, KD, KH, KW), dtype=jnp.float32)

    out = spatio_temporal_filtering(x, fbank, STRIDE)
    out = jax.block_until_ready(out)

    # sanity check against XLA's conv3d (same semantics as F.conv3d)
    ph, pw = (KH - 1) // 2, (KW - 1) // 2
    ref = jax.lax.conv_general_dilated(
        x, fbank,
        window_strides=(STRIDE, STRIDE, STRIDE),
        padding=((0, 0), (ph, ph), (pw, pw)),
        dimension_numbers=("NCDHW", "OIDHW", "NCDHW"))
    ref = jax.block_until_ready(ref)

    assert out.shape == ref.shape, (out.shape, ref.shape)
    if not np.allclose(np.asarray(out), np.asarray(ref), atol=2e-4, rtol=2e-4):
        raise AssertionError("Pallas conv3d does not match reference conv3d")

    print("KERNEL_OK")
</pallas_src>

<mosaic_0001>
module attributes {stable_mosaic.version = 11 : i64} {
  func.func @_conv3d_kernel(%arg0: i32, %arg1: i32, %arg2: i32, %arg3: i32, %arg4: memref<1x1x1x16x144xf32, #tpu.memory_space<vmem>>, %arg5: memref<12x8x16xf32, #tpu.memory_space<vmem>>, %arg6: memref<1x1x8x128xf32, #tpu.memory_space<vmem>>) attributes {dimension_semantics = [#tpu.dimension_semantics<parallel>, #tpu.dimension_semantics<parallel>, #tpu.dimension_semantics<parallel>, #tpu.dimension_semantics<arbitrary>], iteration_bounds = array<i64: 2, 3, 1, 3>, scalar_prefetch = 0 : i64, scratch_operands = 0 : i64, tpu.core_type = #tpu.core_type<tc>, window_params = [{transform_indices = @transform_0, window_bounds = array<i64: 1, 1, 1, 16, 144>}, {pipeline_mode = #tpu.pipeline_mode<synchronous>, transform_indices = @transform_1, window_bounds = array<i64: 12, 8, 16>}, {transform_indices = @transform_2, window_bounds = array<i64: 1, 1, 8, 128>}]} {
    %c4_i32 = arith.constant 4 : i32
    %0 = arith.muli %arg3, %c4_i32 : i32
    %c0_i32 = arith.constant 0 : i32
    %1 = arith.addi %0, %c0_i32 : i32
    %c0_i32_0 = arith.constant 0 : i32
    %2 = arith.addi %1, %c0_i32_0 : i32
    %3 = arith.index_cast %2 : i32 to index
    %c0 = arith.constant 0 : index
    %c0_1 = arith.constant 0 : index
    %4 = vector.load %arg5[%3, %c0, %c0_1] : memref<12x8x16xf32, #tpu.memory_space<vmem>>, vector<1x8x16xf32>
    %5 = vector.shape_cast %4 : vector<1x8x16xf32> to vector<8x16xf32>
    %c0_2 = arith.constant 0 : index
    %c0_3 = arith.constant 0 : index
    %c0_4 = arith.constant 0 : index
    %c0_5 = arith.constant 0 : index
    %c0_6 = arith.constant 0 : index
    %6 = vector.load %arg4[%c0_2, %c0_3, %c0_4, %c0_5, %c0_6] : memref<1x1x1x16x144xf32, #tpu.memory_space<vmem>>, vector<1x1x1x16x128xf32>
    %7 = vector.shape_cast %6 : vector<1x1x1x16x128xf32> to vector<16x128xf32>
    %cst = arith.constant dense<0.000000e+00> : vector<8x128xf32>
    %8 = tpu.matmul %5, %7, %cst {dimension_numbers = #tpu.dot_dimension_numbers<[1], [0], [0], [1], [0, 0, 1, 1], [], []>} : vector<8x16xf32>, vector<16x128xf32>, vector<8x128xf32> -> vector<8x128xf32>
    %c4_i32_7 = arith.constant 4 : i32
    %9 = arith.muli %arg3, %c4_i32_7 : i32
    %c0_i32_8 = arith.constant 0 : i32
    %10 = arith.addi %9, %c0_i32_8 : i32
    %c1_i32 = arith.constant 1 : i32
    %11 = arith.addi %10, %c1_i32 : i32
    %12 = arith.index_cast %11 : i32 to index
    %c0_9 = arith.constant 0 : index
    %c0_10 = arith.constant 0 : index
    %13 = vector.load %arg5[%12, %c0_9, %c0_10] : memref<12x8x16xf32, #tpu.memory_space<vmem>>, vector<1x8x16xf32>
    %14 = vector.shape_cast %13 : vector<1x8x16xf32> to vector<8x16xf32>
    %c0_11 = arith.constant 0 : index
    %c0_12 = arith.constant 0 : index
    %c0_13 = arith.constant 0 : index
    %c0_14 = arith.constant 0 : index
    %c1 = arith.constant 1 : index
    %15 = vector.load %arg4[%c0_11, %c0_12, %c0_13, %c0_14, %c1] : memref<1x1x1x16x144xf32, #tpu.memory_space<vmem>>, vector<1x1x1x16x128xf32>
    %16 = vector.shape_cast %15 : vector<1x1x1x16x128xf32> to vector<16x128xf32>
    %cst_15 = arith.constant dense<0.000000e+00> : vector<8x128xf32>
    %17 = tpu.matmul %14, %16, %cst_15 {dimension_numbers = #tpu.dot_dimension_numbers<[1], [0], [0], [1], [0, 0, 1, 1], [], []>} : vector<8x16xf32>, vector<16x128xf32>, vector<8x128xf32> -> vector<8x128xf32>
    %18 = arith.addf %8, %17 : vector<8x128xf32>
    %c4_i32_16 = arith.constant 4 : i32
    %19 = arith.muli %arg3, %c4_i32_16 : i32
    %c2_i32 = arith.constant 2 : i32
    %20 = arith.addi %19, %c2_i32 : i32
    %c0_i32_17 = arith.constant 0 : i32
    %21 = arith.addi %20, %c0_i32_17 : i32
    %22 = arith.index_cast %21 : i32 to index
    %c0_18 = arith.constant 0 : index
    %c0_19 = arith.constant 0 : index
    %23 = vector.load %arg5[%22, %c0_18, %c0_19] : memref<12x8x16xf32, #tpu.memory_space<vmem>>, vector<1x8x16xf32>
    %24 = vector.shape_cast %23 : vector<1x8x16xf32> to vector<8x16xf32>
    %c0_20 = arith.constant 0 : index
    %c0_21 = arith.constant 0 : index
    %c0_22 = arith.constant 0 : index
    %c0_23 = arith.constant 0 : index
    %c9 = arith.constant 9 : index
    %25 = vector.load %arg4[%c0_20, %c0_21, %c0_22, %c0_23, %c9] : memref<1x1x1x16x144xf32, #tpu.memory_space<vmem>>, vector<1x1x1x16x128xf32>
    %26 = vector.shape_cast %25 : vector<1x1x1x16x128xf32> to vector<16x128xf32>
    %cst_24 = arith.constant dense<0.000000e+00> : vector<8x128xf32>
    %27 = tpu.matmul %24, %26, %cst_24 {dimension_numbers = #tpu.dot_dimension_numbers<[1], [0], [0], [1], [0, 0, 1, 1], [], []>} : vector<8x16xf32>, vector<16x128xf32>, vector<8x128xf32> -> vector<8x128xf32>
    %28 = arith.addf %18, %27 : vector<8x128xf32>
    %c4_i32_25 = arith.constant 4 : i32
    %29 = arith.muli %arg3, %c4_i32_25 : i32
    %c2_i32_26 = arith.constant 2 : i32
    %30 = arith.addi %29, %c2_i32_26 : i32
    %c1_i32_27 = arith.constant 1 : i32
    %31 = arith.addi %30, %c1_i32_27 : i32
    %32 = arith.index_cast %31 : i32 to index
    %c0_28 = arith.constant 0 : index
    %c0_29 = arith.constant 0 : index
    %33 = vector.load %arg5[%32, %c0_28, %c0_29] : memref<12x8x16xf32, #tpu.memory_space<vmem>>, vector<1x8x16xf32>
    %34 = vector.shape_cast %33 : vector<1x8x16xf32> to vector<8x16xf32>
    %c0_30 = arith.constant 0 : index
    %c0_31 = arith.constant 0 : index
    %c0_32 = arith.constant 0 : index
    %c0_33 = arith.constant 0 : index
    %c10 = arith.constant 10 : index
    %35 = vector.load %arg4[%c0_30, %c0_31, %c0_32, %c0_33, %c10] : memref<1x1x1x16x144xf32, #tpu.memory_space<vmem>>, vector<1x1x1x16x128xf32>
    %36 = vector.shape_cast %35 : vector<1x1x1x16x128xf32> to vector<16x128xf32>
    %cst_34 = arith.constant dense<0.000000e+00> : vector<8x128xf32>
    %37 = tpu.matmul %34, %36, %cst_34 {dimension_numbers = #tpu.dot_dimension_numbers<[1], [0], [0], [1], [0, 0, 1, 1], [], []>} : vector<8x16xf32>, vector<16x128xf32>, vector<8x128xf32> -> vector<8x128xf32>
    %38 = arith.addf %28, %37 : vector<8x128xf32>
    %c0_i32_35 = arith.constant 0 : i32
    %39 = arith.cmpi eq, %arg3, %c0_i32_35 : i32
    %40 = arith.extui %39 : i1 to i32
    %c0_i32_36 = arith.constant 0 : i32
    %41 = arith.cmpi ne, %40, %c0_i32_36 : i32
    scf.if %41 {
      %c0_39 = arith.constant 0 : index
      %c0_40 = arith.constant 0 : index
      %c0_41 = arith.constant 0 : index
      %c0_42 = arith.constant 0 : index
      %45 = vector.load %arg6[%c0_39, %c0_40, %c0_41, %c0_42] : memref<1x1x8x128xf32, #tpu.memory_space<vmem>>, vector<1x1x8x128xf32>
      %46 = vector.shape_cast %45 : vector<1x1x8x128xf32> to vector<8x128xf32>
      %47 = vector.shape_cast %38 : vector<8x128xf32> to vector<1x1x8x128xf32>
      tpu.vector_store %arg6[%c0_39, %c0_40, %c0_41, %c0_42], %47 {strides = array<i32>} : memref<1x1x8x128xf32, #tpu.memory_space<vmem>>, vector<1x1x8x128xf32>,
    } else {
    }
    %c0_i32_37 = arith.constant 0 : i32
    %42 = arith.cmpi ne, %arg3, %c0_i32_37 : i32
    %43 = arith.extui %42 : i1 to i32
    %c0_i32_38 = arith.constant 0 : i32
    %44 = arith.cmpi ne, %43, %c0_i32_38 : i32
    scf.if %44 {
      %c0_39 = arith.constant 0 : index
      %c0_40 = arith.constant 0 : index
      %c0_41 = arith.constant 0 : index
      %c0_42 = arith.constant 0 : index
      %45 = vector.load %arg6[%c0_39, %c0_40, %c0_41, %c0_42] : memref<1x1x8x128xf32, #tpu.memory_space<vmem>>, vector<1x1x8x128xf32>
      %46 = vector.shape_cast %45 : vector<1x1x8x128xf32> to vector<8x128xf32>
      %47 = arith.addf %46, %38 : vector<8x128xf32>
      %c0_43 = arith.constant 0 : index
      %c0_44 = arith.constant 0 : index
      %c0_45 = arith.constant 0 : index
      %c0_46 = arith.constant 0 : index
      %48 = vector.load %arg6[%c0_43, %c0_44, %c0_45, %c0_46] : memref<1x1x8x128xf32, #tpu.memory_space<vmem>>, vector<1x1x8x128xf32>
      %49 = vector.shape_cast %48 : vector<1x1x8x128xf32> to vector<8x128xf32>
      %50 = vector.shape_cast %47 : vector<8x128xf32> to vector<1x1x8x128xf32>
      tpu.vector_store %arg6[%c0_43, %c0_44, %c0_45, %c0_46], %50 {strides = array<i32>} : memref<1x1x8x128xf32, #tpu.memory_space<vmem>>, vector<1x1x8x128xf32>,
    } else {
    }
    return
  }
  func.func @transform_0(%arg0: i32, %arg1: i32, %arg2: i32, %arg3: i32) -> (i32, i32, i32, i32, i32) {
    %c2_i32 = arith.constant 2 : i32
    %0 = arith.muli %arg1, %c2_i32 : i32
    %1 = arith.addi %0, %arg3 : i32
    %c0_i32 = arith.constant 0 : i32
    %c0_i32_0 = arith.constant 0 : i32
    %c0_i32_1 = arith.constant 0 : i32
    return %arg0, %1, %arg2, %c0_i32, %c0_i32_0 : i32, i32, i32, i32, i32
  }
  func.func @transform_1(%arg0: i32, %arg1: i32, %arg2: i32, %arg3: i32) -> (i32, i32, i32) {
    %c0_i32 = arith.constant 0 : i32
    %c0_i32_0 = arith.constant 0 : i32
    %c0_i32_1 = arith.constant 0 : i32
    %c0_i32_2 = arith.constant 0 : i32
    return %c0_i32, %c0_i32_0, %c0_i32_1 : i32, i32, i32
  }
  func.func @transform_2(%arg0: i32, %arg1: i32, %arg2: i32, %arg3: i32) -> (i32, i32, i32, i32) {
    %c0_i32 = arith.constant 0 : i32
    %c0_i32_0 = arith.constant 0 : i32
    return %arg0, %arg1, %c0_i32, %arg2 : i32, i32, i32, i32
  }
}

</mosaic_0001>

<llo_original>
// kernel: tpu_custom_call.1
$region0: #{tpu_custom_call.1}
  #allocation0 [shape = 'u32[]', space=smem, size = 0x4, offset = 0x4, fixed_abs, tag = 'smem constant byte address 0x4 - core index']
  #allocation1 [shape = 'u32[72,128]{1,0:T(1,128)}', space=vmem, size = 0x9000, scoped, tag = 'internal scratch']
  %s0 = inlined_call_operand.hbm [shape: f32[2,8,1,16,144], index: 0, kind: input, shape index: {}]
  %s1 = inlined_call_operand.hbm [shape: f32[12,8,16], index: 1, kind: input, shape index: {}]
  %s2 = inlined_call_operand.hbm [shape: f32[2,3,8,128], index: 2, kind: output, shape index: {}]
  %s3 = sld [smem:[#allocation0]]
  $region57: #{tpu_custom_call.1} parent=0
    _
  %s5 = ssub.s32 1, %s3
  %s6 = scalar_select 0, %s5, %s3
  $region1: #{tpu_custom_call.1} parent=0
    #allocation2 [shape = 'u8[32768]{0}', space=vmem, size = 0x8000, scoped, tag = 'input window, operand 0']
    #allocation3 [shape = 's32[2]{0}', space=sflag, size = 0x8, scoped, tag = 'scoped memory for tpu_custom_call.1']
    #allocation4 [shape = 's32[2]{0}', space=sflag, size = 0x8, scoped, tag = 'scoped memory for tpu_custom_call.1']
    #allocation5 [shape = 'u8[49152]{0}', space=vmem, size = 0xc000, scoped, tag = 'input window, operand 1, single buffered']
    #allocation6 [shape = 's32[1]{0}', space=sflag, size = 0x4, scoped, tag = 'scoped memory for tpu_custom_call.1']
    #allocation7 [shape = 'u8[8192]{0}', space=vmem, size = 0x2000, scoped, tag = 'output window, operand 0']
    %7 = vsyncpa [#allocation3], 0
    %s8 = scalar_lea.sflag [#allocation3], 1
    %9 = vsyncpa %s8, 0
    %10 = vsyncpa [#allocation6], 0
    %11 = vsyncpa [#allocation4], 0
    %s12 = scalar_lea.sflag [#allocation4], 1
    %13 = vsyncpa %s12, 0
    loop: start=0, step=1, limit=20
    $region2: #{tpu_custom_call.1} parent=1 // loop_pre_header
      _
    $region3: #{tpu_custom_call.1} parent=1 // loop_header
      %s15 = sphi 0, %s19
      %p16 = scmp.ge.s32.totalorder %s15, 20
      %s22 = sphi 0, %s48
      %s23 = sphi 0, %s44
      %s24 = sphi 0, %s40
      %s25 = sphi 0, %s36
      %s26 = sphi 0, %s22
      %s27 = sphi 0, %s23
      %s28 = sphi 0, %s24
      %s29 = sphi 0, %s25
      %s30 = sphi 0, %s26
      %s31 = sphi 0, %s27
      %s32 = sphi 0, %s28
      %s33 = sphi 0, %s29
      %s59 = sphi 0, %s61
      %s62 = sphi 0, %s59
      %s63 = sphi 0, %s62
      %s79 = sphi 0, %s63
      %s83 = sphi 0, %s83
      %s85 = sphi 0, %s83
      %s86 = sphi 0, %s85
      %s100 = sphi 0, %s86
      %s110 = sphi 0, %s112
      %s113 = sphi 0, %s110
      %s114 = sphi 0, %s113
      %s130 = sphi 0, %s114
    $region4: #{tpu_custom_call.1} parent=1 // loop_header_branch
      %18 = sbr.rel (%p16) target = $region8
    $region5: #{tpu_custom_call.1} parent=1 // loop_body
      %s20 = ssub.s32 %s15, 1
      %s21 = ssub.s32 %s15, 2
      %s34 = sadd.s32 1, %s25
      %p35 = scmp.ge.s32.totalorder %s34, 3
      %s36 = scalar_select %p35, 0, %s34
      %s37 = sadd.s32 1, %s24
      %s38 = scalar_select %p35, %s37, %s24
      %p39 = scmp.ge.s32.totalorder %s38, 1
      %s40 = scalar_select %p39, 0, %s38
      %s41 = sadd.s32 1, %s23
      %s42 = scalar_select %p39, %s41, %s23
      %p43 = scmp.ge.s32.totalorder %s42, 3
      %s44 = scalar_select %p43, 0, %s42
      %s45 = sadd.s32 1, %s22
      %s46 = scalar_select %p43, %s45, %s22
      %p47 = scmp.ge.s32.totalorder %s46, 2
      %s48 = scalar_select %p47, 0, %s46
      %s49 = smul.u32 %s23, 2
      %s50 = sadd.s32 %s49, %s25
      %s51 = smul.u32 %s44, 2
      %s52 = sadd.s32 %s51, %s36
      %s53 = ssub.s32 %s22, %s48
      %s54 = ssub.s32 %s50, %s52
      %s55 = sor.u32 %s53, %s54
      %s56 = ssub.s32 %s24, %s40
      %s57 = sor.u32 %s55, %s56
      %p58 = scmp.eq.s32.totalorder %s57, 0
      %s60 = sadd.s32 %s59, 1
      %s61 = scalar_select %p58, %s59, %s60
      %p64 = pneg %p58
      %p65 = scmp.eq.s32.totalorder %s15, 17
      %p66 = por %p64, %p65
      %p67 = scmp.ne.s32.totalorder %s59, %s62
      %p68 = scmp.eq.s32.totalorder %s15, 0
      %p69 = por %p67, %p68
      %p70 = scmp.ne.s32.totalorder %s59, %s62
      %p71 = scmp.eq.s32.totalorder %s20, 17
      %p72 = por %p70, %p71
      %p73 = scmp.ne.s32.totalorder %s62, %s63
      %p74 = scmp.eq.s32.totalorder %s20, 0
      %p75 = por %p73, %p74
      %p76 = scmp.ne.s32.totalorder %s62, %s63
      %p77 = scmp.eq.s32.totalorder %s21, 17
      %p78 = por %p76, %p77
      %p80 = scmp.ne.s32.totalorder %s63, %s79
      %p81 = scmp.eq.s32.totalorder %s21, 0
      %p82 = por %p80, %p81
      %s84 = sadd.s32 %s83, 1
      %p87 = scmp.eq.s32.totalorder %s15, 17
      %p88 = scmp.ne.s32.totalorder %s83, %s85
      %p89 = scmp.eq.s32.totalorder %s15, 0
      %p90 = por %p88, %p89
      %p91 = scmp.ne.s32.totalorder %s83, %s85
      %p92 = scmp.eq.s32.totalorder %s20, 17
      %p93 = por %p91, %p92
      %p94 = scmp.ne.s32.totalorder %s85, %s86
      %p95 = scmp.eq.s32.totalorder %s20, 0
      %p96 = por %p94, %p95
      %p97 = scmp.ne.s32.totalorder %s85, %s86
      %p98 = scmp.eq.s32.totalorder %s21, 17
      %p99 = por %p97, %p98
      %p101 = scmp.ne.s32.totalorder %s86, %s100
      %p102 = scmp.eq.s32.totalorder %s21, 0
      %p103 = por %p101, %p102
      %s104 = ssub.s32 %s22, %s48
      %s105 = ssub.s32 %s23, %s44
      %s106 = sor.u32 %s104, %s105
      %s107 = ssub.s32 %s24, %s40
      %s108 = sor.u32 %s106, %s107
      %p109 = scmp.eq.s32.totalorder %s108, 0
      %s111 = sadd.s32 %s110, 1
      %s112 = scalar_select %p109, %s110, %s111
      %p115 = pneg %p109
      %p116 = scmp.eq.s32.totalorder %s15, 17
      %p117 = por %p115, %p116
      %p118 = scmp.ne.s32.totalorder %s110, %s113
      %p119 = scmp.eq.s32.totalorder %s15, 0
      %p120 = por %p118, %p119
      %p121 = scmp.ne.s32.totalorder %s110, %s113
      %p122 = scmp.eq.s32.totalorder %s20, 17
      %p123 = por %p121, %p122
      %p124 = scmp.ne.s32.totalorder %s113, %s114
      %p125 = scmp.eq.s32.totalorder %s20, 0
      %p126 = por %p124, %p125
      %p127 = scmp.ne.s32.totalorder %s113, %s114
      %p128 = scmp.eq.s32.totalorder %s21, 17
      %p129 = por %p127, %p128
      %p131 = scmp.ne.s32.totalorder %s114, %s130
      %p132 = scmp.eq.s32.totalorder %s21, 0
      %p133 = por %p131, %p132
      %p134 = scmp.le.s32.totalorder 1, %s15
      %p135 = scmp.lt.s32.totalorder %s15, 19
      %p136 = pnand %p134, %p135
      %p137 = pneg %p136
      // Predicated region
      $region9: #{tpu_custom_call.1} parent=5 // pred_check
        _
      $region10: #{tpu_custom_call.1} parent=5 // pred_check_branch
        %139 = sbr.rel (%p136) target = $region12
      $region11: #{tpu_custom_call.1} parent=5 // pred_region
        %s140 = ssub.s32 %s15, 1
        // Predicated region
        $region13: #{tpu_custom_call.1} parent=11 // pred_check
          %p141 = pneg %p96
        $region14: #{tpu_custom_call.1} parent=11 // pred_check_branch
          %143 = sbr.rel (%p141) target = $region16
        $region15: #{tpu_custom_call.1} parent=11 // pred_region
          %145 = vsyncadd [#allocation6], 0
          %s146 = sshll.u32 %s1, 4
          %s147 = int_to_ptr.hbm [resolvable:$true] %s146
          %s148 = sshll.u32 [#allocation5], 4
          %s149 = int_to_ptr.vmem [resolvable:$true] %s148
          %154 = dma.hbm_to_vmem [thread:$0]  %s147, 1536, %s149, [#allocation6], 128, 128, 8
        $region16: #{tpu_custom_call.1} parent=11 // pred_fallthru
          _
      $region12: #{tpu_custom_call.1} parent=5 // pred_fallthru
        _
      %p155 = scmp.lt.s32.totalorder %s15, 18
      // Predicated region
      $region17: #{tpu_custom_call.1} parent=5 // pred_check
        %p156 = pneg %p155
      $region18: #{tpu_custom_call.1} parent=5 // pred_check_branch
        %158 = sbr.rel (%p156) target = $region20
      $region19: #{tpu_custom_call.1} parent=5 // pred_region
        // Predicated region
        $region21: #{tpu_custom_call.1} parent=19 // pred_check
          %p159 = pneg %p69
        $region22: #{tpu_custom_call.1} parent=19 // pred_check_branch
          %161 = sbr.rel (%p159) target = $region24
        $region23: #{tpu_custom_call.1} parent=19 // pred_region
          %s162 = sand.u32 %s59, 1
          %s163 = scalar_lea.sflag [#allocation3], %s162
          %s164 = sand.u32 %s59, 1
          %s165 = smul.addr %s164, 32
          %s166 = scalar_lea.vmem [#allocation2], %s165
          %s167 = smul.u32 %s23, 2
          %s168 = sadd.s32 %s167, %s25
          %170 = vsyncadd %s163, 0
          %s171 = smul.addr %s24, 4
          %s172 = smul.addr %s168, 4
          %s173 = sadd.s32 %s171, %s172
          %s174 = smul.addr %s22, 32
          %s175 = sadd.s32 %s173, %s174
          %s176 = smul.addr %s175, 8
          %s177 = scalar_lea.hbm %s0, %s176
          %s178 = sshll.u32 %s177, 4
          %s179 = int_to_ptr.hbm [resolvable:$true] %s178
          %s180 = sshll.u32 %s166, 4
          %s181 = int_to_ptr.vmem [resolvable:$true] %s180
          %186 = dma.hbm_to_vmem [thread:$0]  %s179, 512, %s181, %s163, 256, 256, 16
        $region24: #{tpu_custom_call.1} parent=19 // pred_fallthru
          _
      $region20: #{tpu_custom_call.1} parent=5 // pred_fallthru
        _
      %p187 = scmp.le.s32.totalorder 1, %s15
      %p188 = scmp.lt.s32.totalorder %s15, 19
      %p189 = pnand %p187, %p188
      %p190 = pneg %p189
      // Predicated region
      $region25: #{tpu_custom_call.1} parent=5 // pred_check
        _
      $region26: #{tpu_custom_call.1} parent=5 // pred_check_branch
        %192 = sbr.rel (%p189) target = $region28
      $region27: #{tpu_custom_call.1} parent=5 // pred_region
        %s193 = ssub.s32 %s15, 1
        %s194 = sand.u32 %s62, 1
        %s195 = scalar_lea.sflag [#allocation3], %s194
        %s196 = sand.u32 %s62, 1
        %s197 = smul.addr %s196, 32
        %s198 = scalar_lea.vmem [#allocation2], %s197
        // Predicated region
        $region29: #{tpu_custom_call.1} parent=27 // pred_check
          %p199 = pneg %p75
        $region30: #{tpu_custom_call.1} parent=27 // pred_check_branch
          %201 = sbr.rel (%p199) target = $region32
        $region31: #{tpu_custom_call.1} parent=27 // pred_region
          %203 = dma.done %s195, 512
        $region32: #{tpu_custom_call.1} parent=27 // pred_fallthru
          _
        // Predicated region
        $region33: #{tpu_custom_call.1} parent=27 // pred_check
          %p204 = pneg %p96
        $region34: #{tpu_custom_call.1} parent=27 // pred_check_branch
          %206 = sbr.rel (%p204) target = $region36
        $region35: #{tpu_custom_call.1} parent=27 // pred_region
          %208 = dma.done [#allocation6], 1536
        $region36: #{tpu_custom_call.1} parent=27 // pred_fallthru
          _
        %s209 = sand.u32 %s62, 1
        %s210 = scalar_lea.sflag [#allocation3], %s209
        %s211 = sand.u32 %s62, 1
        %s212 = smul.addr %s211, 32
        %s213 = scalar_lea.vmem [#allocation2], %s212
        %p214 = pneg %p75
        %p215 = pneg %p72
        %p216 = pneg %p96
        %p217 = pneg %p93
        %p218 = pneg %p126
        %p219 = pneg %p123
        %s220 = sand.u32 %s113, 1
        %s221 = scalar_lea.sflag [#allocation4], %s220
        %s222 = sand.u32 %s113, 1
        %s223 = smul.addr %s222, 8
        %s224 = scalar_lea.vmem [#allocation7], %s223
        %s225 = smul.u32 %s27, 2
        %s226 = sadd.s32 %s225, %s29
        %s227 = smul.u32 %s29, 4
        %s228 = smul.u32 %s227, 8
        %s229 = scalar_lea.vmem [#allocation5], %s228
        %v230 = vld [vmem:[%s229] sm:$0xff]
        %v231 = vld [vmem:[%s198] sm:$0xff]
        %v232 = vld [vmem:[%s198 + $0x10] sm:$0xff]
        %s233 = sadd.s32 %s227, 1
        %s234 = smul.u32 %s233, 8
        %s235 = scalar_lea.vmem [#allocation5], %s234
        %v236 = vld [vmem:[%s235] sm:$0xff]
        %v237 = vld [vmem:[%s198 + $0x8] sm:$0xff]
        %v238 = vld [vmem:[%s198 + $0x18] sm:$0xff]
        %243 = vrot.lane.b32.xlu0 %v231, 127
        %v244 = vpop.permute.xlu0 %243
        %245 = vrot.lane.b32.xlu0 %v237, 127
        %v246 = vpop.permute.xlu0 %245
        %247 = vrot.lane.b32.xlu0 %v232, 127
        %v248 = vpop.permute.xlu0 %247
        %249 = vrot.lane.b32.xlu0 %v238, 127
        %v250 = vpop.permute.xlu0 %249
        %vm251 = vcmask 1039360
        %v252 = vsel %vm251, %v244, %v246
        %v253 = vsel %vm251, %v248, %v250
        %vm256 = vcmask 130048
        %v258 = vsel %vm256, %v236, 0
        %260 = vmatpush.msra.mxu0 0.0
        %261 = vmatpush.msra.mxu0 0.0
        %262 = vmatpush.msra.mxu0 0.0
        %263 = vmatpush.msra.mxu0 0.0
        %264 = vmatpush.msra.mxu0 0.0
        %265 = vmatpush.msra.mxu0 0.0
        %266 = vmatpush.msra.mxu0 0.0
        %267 = vmatpush.msra.mxu0 0.0
        %268 = vmatpush.msra.mxu0 0.0
        %269 = vmatpush.msra.mxu0 0.0
        %270 = vmatpush.msra.mxu0 0.0
        %271 = vmatpush.msra.mxu0 0.0
        %272 = vmatpush.msra.mxu0 0.0
        %273 = vmatpush.msra.mxu0 0.0
        %274 = vmatpush.msra.mxu0 %v253
        %275 = vmatpush.msra.mxu0 %v252
        %276 = vmatmul.f32.gmra.mxu0 %v258
        %v277 = vpop.f32.mrf.mxu0
        %v278 = vadd.f32 0.0, %v277
        %279 = vdwg.mxu0
        %v281 = vsel %vm256, %v230, 0
        %283 = vmatpush.msra.mxu0 0.0
        %284 = vmatpush.msra.mxu0 0.0
        %285 = vmatpush.msra.mxu0 0.0
        %286 = vmatpush.msra.mxu0 0.0
        %287 = vmatpush.msra.mxu0 0.0
        %288 = vmatpush.msra.mxu0 0.0
        %289 = vmatpush.msra.mxu0 0.0
        %290 = vmatpush.msra.mxu0 0.0
        %291 = vmatpush.msra.mxu0 0.0
        %292 = vmatpush.msra.mxu0 0.0
        %293 = vmatpush.msra.mxu0 0.0
        %294 = vmatpush.msra.mxu0 0.0
        %295 = vmatpush.msra.mxu0 0.0
        %296 = vmatpush.msra.mxu0 0.0
        %297 = vmatpush.msra.mxu0 %v232
        %298 = vmatpush.msra.mxu0 %v231
        %299 = vmatmul.f32.gmra.mxu0 %v281
        %v300 = vpop.f32.mrf.mxu0
        %v301 = vadd.f32 %v278, %v300
        %302 = vdwg.mxu0
        %s303 = sadd.s32 %s227, 2
        %s304 = smul.u32 %s303, 8
        %s305 = scalar_lea.vmem [#allocation5], %s304
        %v306 = vld [vmem:[%s305] sm:$0xff]
        %307 = vrot.lane.b32.xlu0 %v231, 119
        %v308 = vpop.permute.xlu0 %307
        %309 = vrot.lane.b32.xlu0 %v237, 119
        %v310 = vpop.permute.xlu0 %309
        %311 = vrot.lane.b32.xlu0 %v232, 119
        %v312 = vpop.permute.xlu0 %311
        %313 = vrot.lane.b32.xlu0 %v238, 119
        %v314 = vpop.permute.xlu0 %313
        %vm315 = vcmask 973824
        %v316 = vsel %vm315, %v308, %v310
        %v317 = vsel %vm315, %v312, %v314
        %v321 = vsel %vm256, %v306, 0
        %323 = vmatpush.msra.mxu0 0.0
        %324 = vmatpush.msra.mxu0 0.0
        %325 = vmatpush.msra.mxu0 0.0
        %326 = vmatpush.msra.mxu0 0.0
        %327 = vmatpush.msra.mxu0 0.0
        %328 = vmatpush.msra.mxu0 0.0
        %329 = vmatpush.msra.mxu0 0.0
        %330 = vmatpush.msra.mxu0 0.0
        %331 = vmatpush.msra.mxu0 0.0
        %332 = vmatpush.msra.mxu0 0.0
        %333 = vmatpush.msra.mxu0 0.0
        %334 = vmatpush.msra.mxu0 0.0
        %335 = vmatpush.msra.mxu0 0.0
        %336 = vmatpush.msra.mxu0 0.0
        %337 = vmatpush.msra.mxu0 %v317
        %338 = vmatpush.msra.mxu0 %v316
        %339 = vmatmul.f32.gmra.mxu0 %v321
        %v340 = vpop.f32.mrf.mxu0
        %v341 = vadd.f32 0.0, %v340
        %342 = vdwg.mxu0
        %v343 = vadd.f32 %v301, %v341
        %s344 = sadd.s32 %s227, 3
        %s345 = smul.u32 %s344, 8
        %s346 = scalar_lea.vmem [#allocation5], %s345
        %v347 = vld [vmem:[%s346] sm:$0xff]
        %348 = vrot.lane.b32.xlu0 %v231, 118
        %v349 = vpop.permute.xlu0 %348
        %350 = vrot.lane.b32.xlu0 %v237, 118
        %v351 = vpop.permute.xlu0 %350
        %352 = vrot.lane.b32.xlu0 %v232, 118
        %v353 = vpop.permute.xlu0 %352
        %354 = vrot.lane.b32.xlu0 %v238, 118
        %v355 = vpop.permute.xlu0 %354
        %vm356 = vcmask 965632
        %v357 = vsel %vm356, %v349, %v351
        %v358 = vsel %vm356, %v353, %v355
        %v362 = vsel %vm256, %v347, 0
        %364 = vmatpush.msra.mxu0 0.0
        %365 = vmatpush.msra.mxu0 0.0
        %366 = vmatpush.msra.mxu0 0.0
        %367 = vmatpush.msra.mxu0 0.0
        %368 = vmatpush.msra.mxu0 0.0
        %369 = vmatpush.msra.mxu0 0.0
        %370 = vmatpush.msra.mxu0 0.0
        %371 = vmatpush.msra.mxu0 0.0
        %372 = vmatpush.msra.mxu0 0.0
        %373 = vmatpush.msra.mxu0 0.0
        %374 = vmatpush.msra.mxu0 0.0
        %375 = vmatpush.msra.mxu0 0.0
        %376 = vmatpush.msra.mxu0 0.0
        %377 = vmatpush.msra.mxu0 0.0
        %378 = vmatpush.msra.mxu0 %v358
        %379 = vmatpush.msra.mxu0 %v357
        %380 = vmatmul.f32.gmra.mxu0 %v362
        %v381 = vpop.f32.mrf.mxu0
        %v382 = vadd.f32 0.0, %v381
        %383 = vdwg.mxu0
        %v384 = vadd.f32 %v343, %v382
        %p385 = scmp.eq.s32.totalorder %s29, 0
        // Predicated region
        $region37: #{tpu_custom_call.1} parent=27 // pred_check
          %p386 = pneg %p385
        $region38: #{tpu_custom_call.1} parent=27 // pred_check_branch
          %388 = sbr.rel (%p386) target = $region40
        $region39: #{tpu_custom_call.1} parent=27 // pred_region
          %389 = vst [vmem:[%s224] sm:$0xff] %v384
        $region40: #{tpu_custom_call.1} parent=27 // pred_fallthru
          _
        %p390 = scmp.ne.s32.totalorder %s29, 0
        // Predicated region
        $region41: #{tpu_custom_call.1} parent=27 // pred_check
          %p391 = pneg %p390
        $region42: #{tpu_custom_call.1} parent=27 // pred_check_branch
          %393 = sbr.rel (%p391) target = $region44
        $region43: #{tpu_custom_call.1} parent=27 // pred_region
          %v394 = vld [vmem:[%s224] sm:$0xff]
          %v395 = vadd.f32 %v394, %v384
          %396 = vst [vmem:[%s224] sm:$0xff] %v395
        $region44: #{tpu_custom_call.1} parent=27 // pred_fallthru
          _
        %s397 = sand.u32 %s113, 1
        %s398 = scalar_lea.sflag [#allocation4], %s397
        %s399 = sand.u32 %s113, 1
        %s400 = smul.addr %s399, 8
        %s401 = scalar_lea.vmem [#allocation7], %s400
        // Predicated region
        $region45: #{tpu_custom_call.1} parent=27 // pred_check
          %p402 = pneg %p123
        $region46: #{tpu_custom_call.1} parent=27 // pred_check_branch
          %404 = sbr.rel (%p402) target = $region48
        $region47: #{tpu_custom_call.1} parent=27 // pred_region
          %406 = vsyncadd %s398, 0
          %s407 = sadd.s32 %s28, %s27
          %s408 = smul.addr %s26, 3
          %s409 = sadd.s32 %s407, %s408
          %s410 = smul.addr %s409, 8
          %s411 = scalar_lea.hbm %s2, %s410
          %s413 = sshll.u32 %s401, 4
          %s414 = int_to_ptr.vmem [resolvable:$true] %s413
          %s415 = sshll.u32 %s411, 4
          %s416 = int_to_ptr.hbm [resolvable:$true] %s415
          %418 = dma.vmem_to_hbm [thread:$0]  %s414, 128, %s416, %s398
        $region48: #{tpu_custom_call.1} parent=27 // pred_fallthru
          _
      $region28: #{tpu_custom_call.1} parent=5 // pred_fallthru
        _
      %p419 = scmp.le.s32.totalorder 2, %s15
      // Predicated region
      $region49: #{tpu_custom_call.1} parent=5 // pred_check
        %p420 = pneg %p419
      $region50: #{tpu_custom_call.1} parent=5 // pred_check_branch
        %422 = sbr.rel (%p420) target = $region52
      $region51: #{tpu_custom_call.1} parent=5 // pred_region
        %s423 = ssub.s32 %s15, 2
        // Predicated region
        $region53: #{tpu_custom_call.1} parent=51 // pred_check
          %p424 = pneg %p129
        $region54: #{tpu_custom_call.1} parent=51 // pred_check_branch
          %426 = sbr.rel (%p424) target = $region56
        $region55: #{tpu_custom_call.1} parent=51 // pred_region
          %s427 = sand.u32 %s114, 1
          %s428 = scalar_lea.sflag [#allocation4], %s427
          %s429 = sand.u32 %s114, 1
          %s430 = smul.addr %s429, 8
          %s431 = scalar_lea.vmem [#allocation7], %s430
          %433 = dma.done %s428, 128
        $region56: #{tpu_custom_call.1} parent=51 // pred_fallthru
          _
      $region52: #{tpu_custom_call.1} parent=5 // pred_fallthru
        _
    $region6: #{tpu_custom_call.1} parent=1 // loop_footer
      %s19 = sadd.s32 1, %s15
    $region7: #{tpu_custom_call.1} parent=1 // loop_footer_branch
      %14 = sbr.rel target = $region3
    $region8: #{tpu_custom_call.1} parent=1 // loop_exit
      _
    %434 = vsyncpa [#allocation3], 1
    %s435 = scalar_lea.sflag [#allocation3], 1
    %436 = vsyncpa %s435, 1
    %437 = vsyncpa [#allocation6], 1
    %438 = vsyncpa [#allocation4], 1
    %s439 = scalar_lea.sflag [#allocation4], 1
    %440 = vsyncpa %s439, 1

</llo_original>
